<compile_context>
chip_gen: v5e
topology: v5e:2x2
jax: 0.10.0
libtpu: 0.0.40
codegen_flags: <defaults>
</compile_context>

<pallas_src>
import functools
import math

import jax
import jax.numpy as jnp
from jax import lax
from jax.experimental import pallas as pl
from jax.experimental.pallas import tpu as pltpu

_TILE_M = 512      # matmul row tile: bounded VMEM even on v7x (64 MiB)
_GRU_CHUNK = 16    # GRU timesteps per sequential grid step


def _round_up(x, m):
    return ((x + m - 1) // m) * m


def _row_tile(m):
    return min(_TILE_M, _round_up(m, 8))


def _largest_divisor_leq(n, cap):
    for c in range(min(cap, n), 0, -1):
        if n % c == 0:
            return c
    return 1


# ----------------------------------------------------------------------------
# Pallas kernels
# ----------------------------------------------------------------------------
def _matmul_bias_kernel(x_ref, w_ref, b_ref, o_ref):
    x = x_ref[...].astype(jnp.bfloat16)                 # bf16 MXU operands
    o_ref[...] = (
        jnp.dot(x, w_ref[...], preferred_element_type=jnp.float32) + b_ref[...]
    )


def _prelu_mm_bias_kernel(x_ref, w_ref, b_ref, alpha_ref, o_ref):
    x = x_ref[...]
    a = alpha_ref[0]                                    # scalar PReLU slope (SMEM)
    xa = jnp.where(x > 0, x, a * x).astype(jnp.bfloat16)
    o_ref[...] = (
        jnp.dot(xa, w_ref[...], preferred_element_type=jnp.float32) + b_ref[...]
    )


def _prelu_mm_bias_res_kernel(x_ref, res_ref, w_ref, b_ref, alpha_ref, o_ref):
    # Same as above but fuses the residual add (x = x + conv(x)).
    x = x_ref[...]
    a = alpha_ref[0]
    xa = jnp.where(x > 0, x, a * x).astype(jnp.bfloat16)
    o_ref[...] = (
        jnp.dot(xa, w_ref[...], preferred_element_type=jnp.float32)
        + b_ref[...]
        + res_ref[...]
    )


def _fuse_kernel(*refs, norm):
    # refs = (*input_refs, out_ref): sum all inputs elementwise, apply 1/sqrt(n+1).
    o_ref = refs[-1]
    acc = refs[0][...]
    for r in refs[1:-1]:
        acc = acc + r[...]
    o_ref[...] = acc * norm


def _bigru_kernel(xg_f_ref, xg_b_ref, whf_ref, bhf_ref, whb_ref, bhb_ref,
                  of_ref, ob_ref, hf_ref, hb_ref, *, tc):
    """Fused forward+backward GRU recurrence over one chunk of `tc` timesteps.

    xg_*_ref : (tc, B, 3, H)  precomputed x_t @ W_ih^T + b_ih, gate-major layout
    wh*_ref  : (3, H, H)      per-gate transposed W_hh (bf16)
    bh*_ref  : (3, 1, H)      per-gate b_hh (f32)
    o*_ref   : (tc, B, H)     outputs (fwd written ascending, bwd descending)
    h*_ref   : (B, H)         VMEM scratch hidden state, persists across chunks
    """
    c = pl.program_id(0)

    @pl.when(c == 0)
    def _():
        hf_ref[...] = jnp.zeros_like(hf_ref)
        hb_ref[...] = jnp.zeros_like(hb_ref)

    wf = whf_ref[...]
    bf = bhf_ref[...]
    wb = whb_ref[...]
    bb = bhb_ref[...]

    def gru_step(xg, h, w, b):
        # PyTorch gate order [r, z, n]; b_hn sits inside the r* term.
        hb16 = h.astype(jnp.bfloat16)
        hh_r = jnp.dot(hb16, w[0], preferred_element_type=jnp.float32) + b[0]
        hh_z = jnp.dot(hb16, w[1], preferred_element_type=jnp.float32) + b[1]
        hh_n = jnp.dot(hb16, w[2], preferred_element_type=jnp.float32) + b[2]
        r = jax.nn.sigmoid(xg[:, 0] + hh_r)
        z = jax.nn.sigmoid(xg[:, 1] + hh_z)
        n = jnp.tanh(xg[:, 2] + r * hh_n)
        return (1.0 - z) * n + z * h

    def body(i, carry):
        h_f, h_b = carry
        h_f = gru_step(xg_f_ref[i], h_f, wf, bf)
        h_b = gru_step(xg_b_ref[tc - 1 - i], h_b, wb, bb)
        of_ref[i] = h_f
        ob_ref[tc - 1 - i] = h_b
        return (h_f, h_b)

    h_f, h_b = lax.fori_loop(0, tc, body, (hf_ref[...], hb_ref[...]), unroll=True)
    hf_ref[...] = h_f
    hb_ref[...] = h_b


# ----------------------------------------------------------------------------
# Pallas wrappers
# ----------------------------------------------------------------------------
def pallas_matmul_bias(x, w, b_row):
    M, K = x.shape
    N = w.shape[1]
    tm = _row_tile(M)
    return pl.pallas_call(
        _matmul_bias_kernel,
        out_shape=jax.ShapeDtypeStruct((M, N), jnp.float32),
        grid=(pl.cdiv(M, tm),),
        in_specs=[
            pl.BlockSpec((tm, K), lambda i: (i, 0)),
            pl.BlockSpec((K, N), lambda i: (0, 0)),
            pl.BlockSpec((1, N), lambda i: (0, 0)),
        ],
        out_specs=pl.BlockSpec((tm, N), lambda i: (i, 0)),
        compiler_params=pltpu.CompilerParams(dimension_semantics=("parallel",)),
    )(x, w, b_row)


def pallas_prelu_matmul_bias(x, w, b_row, alpha, residual=None):
    M, K = x.shape
    N = w.shape[1]
    tm = _row_tile(M)
    x_spec = pl.BlockSpec((tm, K), lambda i: (i, 0))
    w_spec = pl.BlockSpec((K, N), lambda i: (0, 0))
    b_spec = pl.BlockSpec((1, N), lambda i: (0, 0))
    a_spec = pl.BlockSpec(memory_space=pltpu.MemorySpace.SMEM)
    o_spec = pl.BlockSpec((tm, N), lambda i: (i, 0))
    cp = pltpu.CompilerParams(dimension_semantics=("parallel",))
    if residual is None:
        return pl.pallas_call(
            _prelu_mm_bias_kernel,
            out_shape=jax.ShapeDtypeStruct((M, N), jnp.float32),
            grid=(pl.cdiv(M, tm),),
            in_specs=[x_spec, w_spec, b_spec, a_spec],
            out_specs=o_spec,
            compiler_params=cp,
        )(x, w, b_row, alpha)
    r_spec = pl.BlockSpec((tm, N), lambda i: (i, 0))
    return pl.pallas_call(
        _prelu_mm_bias_res_kernel,
        out_shape=jax.ShapeDtypeStruct((M, N), jnp.float32),
        grid=(pl.cdiv(M, tm),),
        in_specs=[x_spec, r_spec, w_spec, b_spec, a_spec],
        out_specs=o_spec,
        compiler_params=cp,
    )(x, residual, w, b_row, alpha)


def pallas_fuse(tensors, norm):
    B, T, C = tensors[0].shape
    M = B * T
    flat = [t.reshape(M, C) for t in tensors]
    tm = _row_tile(M)
    out = pl.pallas_call(
        functools.partial(_fuse_kernel, norm=norm),
        out_shape=jax.ShapeDtypeStruct((M, C), jnp.float32),
        grid=(pl.cdiv(M, tm),),
        in_specs=[pl.BlockSpec((tm, C), lambda i: (i, 0)) for _ in flat],
        out_specs=pl.BlockSpec((tm, C), lambda i: (i, 0)),
        compiler_params=pltpu.CompilerParams(dimension_semantics=("parallel",)),
    )(*flat)
    return out.reshape(B, T, C)


def pallas_bigru(xg_f, xg_b, w_hhT_f, b_hh_f, w_hhT_b, b_hh_b):
    T, B, _, H = xg_f.shape
    tc = _largest_divisor_leq(T, _GRU_CHUNK)
    nc = T // tc
    kernel = functools.partial(_bigru_kernel, tc=tc)
    out_shape = (jax.ShapeDtypeStruct((T, B, H), jnp.float32),
                 jax.ShapeDtypeStruct((T, B, H), jnp.float32))
    return pl.pallas_call(
        kernel,
        out_shape=out_shape,
        grid=(nc,),
        in_specs=[
            pl.BlockSpec((tc, B, 3, H), lambda c: (c, 0, 0, 0)),
            pl.BlockSpec((tc, B, 3, H), lambda c: (nc - 1 - c, 0, 0, 0)),  # bwd view
            pl.BlockSpec((3, H, H), lambda c: (0, 0, 0)),
            pl.BlockSpec((3, 1, H), lambda c: (0, 0, 0)),
            pl.BlockSpec((3, H, H), lambda c: (0, 0, 0)),
            pl.BlockSpec((3, 1, H), lambda c: (0, 0, 0)),
        ],
        out_specs=(
            pl.BlockSpec((tc, B, H), lambda c: (c, 0, 0)),
            pl.BlockSpec((tc, B, H), lambda c: (nc - 1 - c, 0, 0)),
        ),
        scratch_shapes=[pltpu.VMEM((B, H), jnp.float32),
                        pltpu.VMEM((B, H), jnp.float32)],
        compiler_params=pltpu.CompilerParams(dimension_semantics=("arbitrary",)),
    )(xg_f, xg_b, w_hhT_f, b_hh_f, w_hhT_b, b_hh_b)


# ----------------------------------------------------------------------------
# Layer glue (im2col / reshapes only; weights are already kernel-ready)
# ----------------------------------------------------------------------------
def prelu_conv_same(p, x, dilation, residual=None):
    """Conv1d(PReLU(x)), kernel=3, stride=1, padding=dilation ('same')."""
    B, T, Cin = x.shape
    K, d = p["K"], dilation
    xp = jnp.pad(x, ((0, 0), (d, d), (0, 0)))
    # PReLU commutes with zero-padding / gather since PReLU(0) == 0.
    cols = jnp.concatenate([xp[:, k * d:k * d + T, :] for k in range(K)], axis=-1)
    res2d = None if residual is None else residual.reshape(B * T, p["Cout"])
    out = pallas_prelu_matmul_bias(cols.reshape(B * T, K * Cin),
                                   p["wf"], p["b_row"], p["alpha"], res2d)
    return out.reshape(B, T, p["Cout"])


def prelu_conv_patch(p, x):
    """Conv1d(PReLU(x)) with kernel_size == stride (pure-reshape im2col)."""
    B, T, Cin = x.shape
    K = p["K"]
    T_out = T // K
    cols = x[:, :T_out * K, :].reshape(B * T_out, K * Cin)
    out = pallas_prelu_matmul_bias(cols, p["wf"], p["b_row"], p["alpha"])
    return out.reshape(B, T_out, p["Cout"])


def conv_block_apply(p, x):
    """ConvBlock: 3 residual dilated PReLU-convs (+ optional strided down-conv)."""
    for d, cp in zip(p["dilations"], p["convs"]):
        x = prelu_conv_same(cp, x, d, residual=x)       # fused residual add
    res = x
    if p["rescale"] is not None:
        x = prelu_conv_patch(p["rescale"], x)
    return x, res, None


def gru_apply(gp, x_btc):
    """2-layer bidirectional GRU, batch_first semantics. x: (B, T, C)."""
    x = jnp.transpose(x_btc, (1, 0, 2))                 # (T, B, C) once (small tensor)
    T, B, _ = x.shape
    for layer in gp["layers"]:
        f, bw = layer["fwd"], layer["bwd"]
        H = f["H"]
        I = x.shape[-1]
        x2d = x.reshape(T * B, I)
        # xg is produced directly in (T, B, 3, H) layout: no big-transpose, no [::-1].
        xg_f = pallas_matmul_bias(x2d, f["w_ihT"], f["b_ih"]).reshape(T, B, 3, H)
        xg_b = pallas_matmul_bias(x2d, bw["w_ihT"], bw["b_ih"]).reshape(T, B, 3, H)
        out_f, out_b = pallas_bigru(xg_f, xg_b,
                                    f["w_hhT"], f["b_hh"],
                                    bw["w_hhT"], bw["b_hh"])
        x = jnp.concatenate([out_f, out_b], axis=-1)    # (T, B, 2H)
    return jnp.transpose(x, (1, 0, 2))                  # (B, T, 2H)


def conditioner_encoder_forward(params, x_nct, x_mel_nct):
    """Matches ConditionerEncoder.forward (with_gru_residual=False,
    with_extra_conv_block=False, seq_model='gru')."""
    x = jnp.transpose(x_nct, (0, 2, 1))                 # (B, T, C)
    x_mel = jnp.transpose(x_mel_nct, (0, 2, 1))         # (B, T', oc)

    outputs, lengths = [], []
    for i, ds in enumerate(params["ds_modules"]):
        lengths.append(x.shape[1])
        x, res, _ = conv_block_apply(ds, x)
        st = params["st_convs"][i]
        if st is not None:
            outputs.append(prelu_conv_patch(st, res))
    outputs.append(x)

    norm = 1.0 / math.sqrt(len(outputs) + 1)
    out = pallas_fuse([x_mel] + outputs, norm)

    out, *_ = conv_block_apply(params["conv_block1"], out)
    out = gru_apply(params["gru"], out)
    out, *_ = conv_block_apply(params["conv_block2"], out)

    return jnp.transpose(out, (0, 2, 1)), lengths[::-1]  # back to NCT


# ----------------------------------------------------------------------------
# Deterministic parameter init (PyTorch-shaped) + one-time kernel-ready prep
# ----------------------------------------------------------------------------
def _init_prelu_conv(key, cin, cout, k):
    kw, kb = jax.random.split(key)
    s = 1.0 / math.sqrt(cin * k)
    return {
        "w": jax.random.uniform(kw, (cout, cin, k), jnp.float32, -s, s),
        "b": jax.random.uniform(kb, (cout,), jnp.float32, -s, s),
        "alpha": jnp.full((1,), 0.25, jnp.float32),
    }


def _init_conv_block(key, n_channels, r=1, scale_type=None):
    keys = jax.random.split(key, 4)
    convs = [_init_prelu_conv(keys[i], n_channels, n_channels, 3) for i in range(3)]
    rescale = None
    if scale_type == "down":
        rescale = _init_prelu_conv(keys[3], n_channels, 2 * n_channels, r)
    return {"convs": convs, "rescale": rescale, "dilations": (1, 2, 4)}


def init_conditioner_encoder(key, ds_factors, input_channels):
    c = input_channels
    n = len(ds_factors)
    oc = c * 2 ** n
    keys = iter(jax.random.split(key, 4 * n + 16))

    ds_modules = [_init_conv_block(next(keys), c * 2 ** i, r, "down")
                  for i, r in enumerate(ds_factors)]

    # make_st_convs rates
    rates = [ds_factors[-1]]
    for r in ds_factors[-2::-1]:
        rates.append(rates[-1] * r)
    rates = rates[::-1]
    num_layers = n - 1
    st_convs = []
    for i in range(n):
        if i >= num_layers:
            st_convs.append(None)
        else:
            st_convs.append(_init_prelu_conv(next(keys), c * 2 ** i, oc, rates[i]))

    conv_block1 = _init_conv_block(next(keys), oc)
    conv_block2 = _init_conv_block(next(keys), oc)

    H = oc // 2
    layers = []
    for l in range(2):
        in_size = oc if l == 0 else 2 * H
        layer = {}
        for dname in ("fwd", "bwd"):
            k1, k2, k3, k4 = jax.random.split(next(keys), 4)
            s = 1.0 / math.sqrt(H)
            layer[dname] = {
                "w_ih": jax.random.uniform(k1, (3 * H, in_size), jnp.float32, -s, s),
                "w_hh": jax.random.uniform(k2, (3 * H, H), jnp.float32, -s, s),
                "b_ih": jax.random.uniform(k3, (3 * H,), jnp.float32, -s, s),
                "b_hh": jax.random.uniform(k4, (3 * H,), jnp.float32, -s, s),
            }
        layers.append(layer)

    return {"ds_modules": ds_modules, "st_convs": st_convs,
            "conv_block1": conv_block1, "conv_block2": conv_block2,
            "gru": {"layers": layers}}


def _prep_conv(p):
    w = p["w"]                                           # (Cout, Cin, K)
    cout, cin, k = w.shape
    return {
        "wf": jnp.transpose(w, (2, 1, 0)).reshape(k * cin, cout).astype(jnp.bfloat16),
        "b_row": p["b"].reshape(1, cout).astype(jnp.float32),
        "alpha": p["alpha"].reshape(1).astype(jnp.float32),
        "K": k, "Cout": cout,
    }


def _prep_block(p):
    return {"dilations": p["dilations"],
            "convs": [_prep_conv(c) for c in p["convs"]],
            "rescale": None if p["rescale"] is None else _prep_conv(p["rescale"])}


def _prep_gru_dir(d):
    H = d["w_hh"].shape[1]
    return {
        "w_ihT": jnp.transpose(d["w_ih"]).astype(jnp.bfloat16),            # (I, 3H)
        "b_ih": d["b_ih"].reshape(1, 3 * H).astype(jnp.float32),
        "w_hhT": jnp.transpose(d["w_hh"].reshape(3, H, H), (0, 2, 1)).astype(jnp.bfloat16),
        "b_hh": d["b_hh"].reshape(3, 1, H).astype(jnp.float32),
        "H": H,
    }


def prepare_params(raw):
    """One-time hoist of all weight transposes / reshapes / bf16 casts."""
    return {
        "ds_modules": [_prep_block(b) for b in raw["ds_modules"]],
        "st_convs": [None if p is None else _prep_conv(p) for p in raw["st_convs"]],
        "conv_block1": _prep_block(raw["conv_block1"]),
        "conv_block2": _prep_block(raw["conv_block2"]),
        "gru": {"layers": [{k: _prep_gru_dir(v) for k, v in layer.items()}
                           for layer in raw["gru"]["layers"]]},
    }


# ----------------------------------------------------------------------------
# Demo
# ----------------------------------------------------------------------------
if __name__ == "__main__":
    key = jax.random.PRNGKey(0)
    kp, kx, km = jax.random.split(key, 3)

    B, C, T = 2, 4, 16
    ds_factors = [2, 2]
    oc = C * 2 ** len(ds_factors)                        # 16
    T_final = T // (ds_factors[0] * ds_factors[1])       # 4

    raw_params = init_conditioner_encoder(kp, ds_factors, C)
    params = prepare_params(raw_params)                  # one-time preprocessing

    x = jax.random.normal(kx, (B, C, T), jnp.float32)            # NCT like PyTorch
    x_mel = jax.random.normal(km, (B, oc, T_final), jnp.float32)

    out, lengths = conditioner_encoder_forward(params, x, x_mel)
    out = jax.block_until_ready(out)

    assert out.shape == (B, oc, T_final), out.shape
    assert lengths == [T // ds_factors[0], T], lengths
    assert bool(jnp.all(jnp.isfinite(out)))
    print("KERNEL_OK")
</pallas_src>

<mosaic_0001>
module attributes {stable_mosaic.version = 11 : i64} {
  func.func @_prelu_mm_bias_res_kernel(%arg0: i32, %arg1: memref<32x12xf32, #tpu.memory_space<vmem>>, %arg2: memref<32x4xf32, #tpu.memory_space<vmem>>, %arg3: memref<12x4xbf16, #tpu.memory_space<vmem>>, %arg4: memref<1x4xf32, #tpu.memory_space<vmem>>, %arg5: memref<1xf32, #tpu.memory_space<smem>>, %arg6: memref<32x4xf32, #tpu.memory_space<vmem>>) attributes {dimension_semantics = [#tpu.dimension_semantics<parallel>], iteration_bounds = array<i64: 1>, scalar_prefetch = 0 : i64, scratch_operands = 0 : i64, tpu.core_type = #tpu.core_type<tc>, window_params = [{transform_indices = @transform_0, window_bounds = array<i64: 32, 12>}, {transform_indices = @transform_1, window_bounds = array<i64: 32, 4>}, {pipeline_mode = #tpu.pipeline_mode<synchronous>, transform_indices = @transform_2, window_bounds = array<i64: 12, 4>}, {pipeline_mode = #tpu.pipeline_mode<synchronous>, transform_indices = @transform_3, window_bounds = array<i64: 1, 4>}, {transform_indices = @transform_4, window_bounds = array<i64: 1>}, {transform_indices = @transform_5, window_bounds = array<i64: 32, 4>}]} {
    %c0 = arith.constant 0 : index
    %c0_0 = arith.constant 0 : index
    %0 = vector.load %arg1[%c0, %c0_0] : memref<32x12xf32, #tpu.memory_space<vmem>>, vector<32x12xf32>
    %c0_1 = arith.constant 0 : index
    %1 = memref.load %arg5[%c0_1] : memref<1xf32, #tpu.memory_space<smem>>
    %cst = arith.constant 0.000000e+00 : f32
    %2 = vector.broadcast %cst : f32 to vector<32x12xf32>
    %3 = arith.cmpf ogt, %0, %2 : vector<32x12xf32>
    %4 = vector.broadcast %1 : f32 to vector<32x12xf32>
    %5 = arith.mulf %4, %0 : vector<32x12xf32>
    %6 = arith.select %3, %0, %5 : vector<32x12xi1>, vector<32x12xf32>
    %7 = arith.truncf %6 : vector<32x12xf32> to vector<32x12xbf16>
    %c0_2 = arith.constant 0 : index
    %c0_3 = arith.constant 0 : index
    %8 = vector.load %arg3[%c0_2, %c0_3] : memref<12x4xbf16, #tpu.memory_space<vmem>>, vector<12x4xbf16>
    %cst_4 = arith.constant dense<0.000000e+00> : vector<32x4xf32>
    %9 = tpu.matmul %7, %8, %cst_4 {dimension_numbers = #tpu.dot_dimension_numbers<[1], [0], [0], [1], [0, 0, 1, 1], [], []>} : vector<32x12xbf16>, vector<12x4xbf16>, vector<32x4xf32> -> vector<32x4xf32>
    %c0_5 = arith.constant 0 : index
    %c0_6 = arith.constant 0 : index
    %10 = vector.load %arg4[%c0_5, %c0_6] : memref<1x4xf32, #tpu.memory_space<vmem>>, vector<1x4xf32>
    %11 = vector.broadcast %10 : vector<1x4xf32> to vector<32x4xf32>
    %12 = arith.addf %9, %11 : vector<32x4xf32>
    %c0_7 = arith.constant 0 : index
    %c0_8 = arith.constant 0 : index
    %13 = vector.load %arg2[%c0_7, %c0_8] : memref<32x4xf32, #tpu.memory_space<vmem>>, vector<32x4xf32>
    %14 = arith.addf %12, %13 : vector<32x4xf32>
    %c0_9 = arith.constant 0 : index
    %c0_10 = arith.constant 0 : index
    %15 = vector.load %arg6[%c0_9, %c0_10] : memref<32x4xf32, #tpu.memory_space<vmem>>, vector<32x4xf32>
    tpu.vector_store %arg6[%c0_9, %c0_10], %14 {strides = array<i32>} : memref<32x4xf32, #tpu.memory_space<vmem>>, vector<32x4xf32>,
    return
  }
  func.func @transform_0(%arg0: i32) -> (i32, i32) {
    %c0_i32 = arith.constant 0 : i32
    %c0_i32_0 = arith.constant 0 : i32
    return %arg0, %c0_i32 : i32, i32
  }
  func.func @transform_1(%arg0: i32) -> (i32, i32) {
    %c0_i32 = arith.constant 0 : i32
    %c0_i32_0 = arith.constant 0 : i32
    return %arg0, %c0_i32 : i32, i32
  }
  func.func @transform_2(%arg0: i32) -> (i32, i32) {
    %c0_i32 = arith.constant 0 : i32
    %c0_i32_0 = arith.constant 0 : i32
    %c0_i32_1 = arith.constant 0 : i32
    return %c0_i32, %c0_i32_0 : i32, i32
  }
  func.func @transform_3(%arg0: i32) -> (i32, i32) {
    %c0_i32 = arith.constant 0 : i32
    %c0_i32_0 = arith.constant 0 : i32
    %c0_i32_1 = arith.constant 0 : i32
    return %c0_i32, %c0_i32_0 : i32, i32
  }
  func.func @transform_4(%arg0: i32) -> i32 {
    %c0_i32 = arith.constant 0 : i32
    %c0_i32_0 = arith.constant 0 : i32
    return %c0_i32 : i32
  }
  func.func @transform_5(%arg0: i32) -> (i32, i32) {
    %c0_i32 = arith.constant 0 : i32
    %c0_i32_0 = arith.constant 0 : i32
    return %arg0, %c0_i32 : i32, i32
  }
}

</mosaic_0001>

<llo_original>
// kernel: tpu_custom_call.1
$region0: #{tpu_custom_call.1}
  #allocation0 [shape = 'u32[]', space=smem, size = 0x4, offset = 0x4, fixed_abs, tag = 'smem constant byte address 0x4 - core index']
  #allocation1 [shape = 'u32[72,128]{1,0:T(1,128)}', space=vmem, size = 0x9000, scoped, tag = 'internal scratch']
  #allocation2 [shape = 'f32[1]{0:T(128)S(6)}', space=smem, size = 0x200, scoped, tag = 'scoped memory for tpu_custom_call.1']
  %s0 = inlined_call_operand.vmem [shape: f32[32,12], index: 0, kind: input, shape index: {}]
  %s1 = inlined_call_operand.vmem [shape: f32[32,4], index: 1, kind: input, shape index: {}]
  %s2 = inlined_call_operand.vmem [shape: bf16[12,4], index: 2, kind: input, shape index: {}]
  %s3 = inlined_call_operand.vmem [shape: f32[1,4], index: 3, kind: input, shape index: {}]
  %s4 = inlined_call_operand.<no memory space> [shape: f32[1], index: 4, kind: input, shape index: {}]
  %s5 = inlined_call_operand.vmem [shape: f32[32,4], index: 5, kind: output, shape index: {}]
  %s6 = sld [smem:[#allocation0]]
  $region30: #{tpu_custom_call.1} parent=0
    _
  %s8 = ssub.s32 1, %s6
  %s9 = scalar_select 0, %s8, %s6
  %10 = sst [smem:[#allocation2]] %s4
  // Predicated region
  $region2: #{tpu_custom_call.1} parent=0 // pred_check
    _
  $region3: #{tpu_custom_call.1} parent=0 // pred_check_branch
    %12 = sbr.rel (0) target = $region5
  $region4: #{tpu_custom_call.1} parent=0 // pred_region
    _
  $region5: #{tpu_custom_call.1} parent=0 // pred_fallthru
    _
  // Predicated region
  $region6: #{tpu_custom_call.1} parent=0 // pred_check
    _
  $region7: #{tpu_custom_call.1} parent=0 // pred_check_branch
    %14 = sbr.rel (0) target = $region9
  $region8: #{tpu_custom_call.1} parent=0 // pred_region
    _
  $region9: #{tpu_custom_call.1} parent=0 // pred_fallthru
    _
  // Predicated region
  $region10: #{tpu_custom_call.1} parent=0 // pred_check
    _
  $region11: #{tpu_custom_call.1} parent=0 // pred_check_branch
    %16 = sbr.rel (0) target = $region13
  $region12: #{tpu_custom_call.1} parent=0 // pred_region
    _
  $region13: #{tpu_custom_call.1} parent=0 // pred_fallthru
    _
  // Predicated region
  $region14: #{tpu_custom_call.1} parent=0 // pred_check
    _
  $region15: #{tpu_custom_call.1} parent=0 // pred_check_branch
    %18 = sbr.rel (0) target = $region17
  $region16: #{tpu_custom_call.1} parent=0 // pred_region
    _
  $region17: #{tpu_custom_call.1} parent=0 // pred_fallthru
    _
  // Predicated region
  $region18: #{tpu_custom_call.1} parent=0 // pred_check
    _
  $region19: #{tpu_custom_call.1} parent=0 // pred_check_branch
    %20 = sbr.rel (0) target = $region21
  $region20: #{tpu_custom_call.1} parent=0 // pred_region
    _
  $region21: #{tpu_custom_call.1} parent=0 // pred_fallthru
    _
  %v22 = vld [vmem:[%s0] sm:$0xff]
  %v23 = vld [vmem:[%s0 + $0x8] sm:$0xff]
  %v24 = vld [vmem:[%s0 + $0x10] sm:$0xff]
  %v25 = vld [vmem:[%s0 + $0x18] sm:$0xff]
  %s26 = sld [smem:[#allocation2]]
  %vm27 = vcmp.gt.f32.partialorder %v22, 0.0
  %vm28 = vcmp.gt.f32.partialorder %v23, 0.0
  %vm29 = vcmp.gt.f32.partialorder %v24, 0.0
  %vm30 = vcmp.gt.f32.partialorder %v25, 0.0
  %v31 = vstv %s26
  %v32 = vmul.f32 %v31, %v22
  %v33 = vmul.f32 %v31, %v23
  %v34 = vmul.f32 %v31, %v24
  %v35 = vmul.f32 %v31, %v25
  %v36 = vsel %vm27, %v22, %v32
  %v37 = vsel %vm28, %v23, %v33
  %v38 = vsel %vm29, %v24, %v34
  %v39 = vsel %vm30, %v25, %v35
  %v40 = vpack.c.bf16 %v37, %v36
  %v41 = vpack.c.bf16 %v39, %v38
  %v42 = vld [vmem:[%s2] sm:$0xf]
  %v43 = vld [vmem:[%s2 + $0x4] sm:$0x3]
  %v44 = vld [vmem:[%s3] sm:$0x1]
  %v46 = vperm.slane %v44, 0
  %v50 = vunpack.c.l.b16 %v42
  %v51 = vunpack.c.l.b16 %v43
  %v52 = vpack.c.b16 %v51, %v50
  %vm53 = vcmask 97280
  %v55 = vsel %vm53, %v40, 0
  %v58 = vsel %vm53, %v41, 0
  %vm60 = vcmask 1045504
  %v62 = vsel %vm60, %v52, 0
  %64 = vmatpush.bf16.msra.mxu0 0
  %65 = vmatpush.bf16.msra.mxu0 0
  %66 = vmatpush.bf16.msra.mxu0 0
  %67 = vmatpush.bf16.msra.mxu0 0
  %68 = vmatpush.bf16.msra.mxu0 0
  %69 = vmatpush.bf16.msra.mxu0 0
  %70 = vmatpush.bf16.msra.mxu0 0
  %71 = vmatpush.bf16.msra.mxu0 %v62
  %72 = vmatmul.bf16.gmra.mxu0 %v55
  %v73 = vpop.f32.mrf.mxu0
  %v74 = vadd.f32 %v46, %v73
  %v75 = vpop.f32.mrf.mxu0
  %v76 = vadd.f32 %v46, %v75
  %77 = vmatmul.bf16.gmra.mxu0 %v58
  %v78 = vpop.f32.mrf.mxu0
  %v79 = vadd.f32 %v46, %v78
  %v80 = vpop.f32.mrf.mxu0
  %v81 = vadd.f32 %v46, %v80
  %82 = vdwg.mxu0
  %v83 = vld [vmem:[%s1] sm:$0xff]
  %v84 = vld [vmem:[%s1 + $0x8] sm:$0xff]
  %v85 = vld [vmem:[%s1 + $0x10] sm:$0xff]
  %v86 = vld [vmem:[%s1 + $0x18] sm:$0xff]
  %v87 = vadd.f32 %v74, %v83
  %v88 = vadd.f32 %v76, %v84
  %v89 = vadd.f32 %v79, %v85
  %v90 = vadd.f32 %v81, %v86
  %vm91 = vcmask 31744
  %92 = vst.msk [vmem:[%s5] sm:$0xff] %vm91, %v87
  %93 = vst.msk [vmem:[%s5 + $0x8] sm:$0xff] %vm91, %v88
  %94 = vst.msk [vmem:[%s5 + $0x10] sm:$0xff] %vm91, %v89
  %95 = vst.msk [vmem:[%s5 + $0x18] sm:$0xff] %vm91, %v90
  // Predicated region
  $region22: #{tpu_custom_call.1} parent=0 // pred_check
    _
  $region23: #{tpu_custom_call.1} parent=0 // pred_check_branch
    %97 = sbr.rel (0) target = $region25
  $region24: #{tpu_custom_call.1} parent=0 // pred_region
    _
  $region25: #{tpu_custom_call.1} parent=0 // pred_fallthru
    _
  // Predicated region
  $region26: #{tpu_custom_call.1} parent=0 // pred_check
    _
  $region27: #{tpu_custom_call.1} parent=0 // pred_check_branch
    %99 = sbr.rel (0) target = $region29
  $region28: #{tpu_custom_call.1} parent=0 // pred_region
    _
  $region29: #{tpu_custom_call.1} parent=0 // pred_fallthru
    _

</llo_original>
